<compile_context>
chip_gen: v7x
topology: tpu7x:2x2x1
jax: 0.10.0
libtpu: 0.0.40
codegen_flags: <defaults>
</compile_context>

<pallas_src>
import functools

import jax
import jax.numpy as jnp
from jax.experimental import pallas as pl
from jax.experimental.pallas import tpu as pltpu

GAMMA = 1.5
ALPHA = 0.25
LANE = 128
SUBLANE = 8
PAD_LOGIT = -100.0  # with y=0: bce, p, (1-p_t)^gamma all underflow -> exactly-zero contribution


def _cdiv(a, b):
    return -(-a // b)


def _round_up(a, m):
    return _cdiv(a, m) * m


@functools.lru_cache(maxsize=1)
def _tpu_defaults():
    """(num_shards, tile_rows) defaults based on the attached TPU generation."""
    try:
        kind = jax.devices()[0].device_kind.lower()
    except Exception:  # no device / CPU fallback: stay conservative
        kind = ""
    is_v7 = "v7" in kind
    # Only v7x has 2 TensorCores per chip worth sharding over; on v5e/v6e a shard
    # axis is just a serial grid dim that adds per-step overhead.
    num_shards = 2 if is_v7 else 1
    # v7x's 3.2 TB/s HBM makes the ~0.35us per-step overhead relatively larger;
    # amortize with bigger tiles (still only ~2 MiB double-buffered per input).
    tile_rows = 2048 if is_v7 else 1024
    return num_shards, tile_rows


def _focal_loss_kernel(pred_ref, true_ref, out_ref, *, gamma, alpha,
                       rows_total, tile_rows, steps_per_shard, need_mask):
    """Accumulate per-(sublane,lane) partial sums of the focal loss into out_ref."""
    step = pl.program_id(1)

    @pl.when(step == 0)
    def _():
        out_ref[...] = jnp.zeros_like(out_ref)

    # Cast-on-load: inputs stay in their native (possibly bf16) dtype in HBM/VMEM,
    # all math is f32 in-register.
    x = pred_ref[...].astype(jnp.float32)
    y = true_ref[...].astype(jnp.float32)

    # One exp per element, shared by the stable BCE-with-logits and the sigmoid:
    #   e   = exp(-|x|)
    #   bce = max(x, 0) - x*y + log1p(e)
    #   p   = sigmoid(x) = where(x >= 0, 1/(1+e), e/(1+e))
    e = jnp.exp(-jnp.abs(x))
    bce = jnp.maximum(x, 0.0) - x * y + jnp.log1p(e)

    # approx reciprocal: single EUP push, ~2^-12 rel. error (irrelevant for a mean loss)
    r = pl.reciprocal(1.0 + e, approx=True)
    p = jnp.where(x >= 0.0, r, e * r)

    # 1 - p_t  with  p_t = y*p + (1-y)*(1-p)   (works for soft labels too)
    t = p + y - 2.0 * p * y
    # alpha_factor = y*alpha + (1-y)*(1-alpha)
    alpha_factor = (1.0 - alpha) + y * (2.0 * alpha - 1.0)

    # modulating_factor = (1 - p_t) ** gamma ; static specialization avoids pow (exp+log)
    if gamma == 1.5:
        mf = t * jnp.sqrt(t)
    elif gamma == 2.0:
        mf = t * t
    elif gamma == 1.0:
        mf = t
    elif gamma == 0.0:
        mf = jnp.ones_like(t)
    else:
        mf = t ** gamma

    loss = bce * alpha_factor * mf

    # Ragged-tail handling: rows >= rows_total in this tile are either stale VMEM
    # (partial edge block) or a redundant clamped block; zero them out.  Pure VPU
    # iota+cmp+select, only emitted when the grid does not cover rows_total exactly.
    if need_mask:
        g = pl.program_id(0) * steps_per_shard + step          # global block index
        remaining = rows_total - g * tile_rows                  # may be <=0 or >tile_rows
        row_idx = jax.lax.broadcasted_iota(jnp.int32, loss.shape, 0)
        loss = jnp.where(row_idx < remaining, loss, 0.0)

    # Fold the (tile_rows, 128) tile onto the (8, 128) vreg-shaped accumulator
    # with pure VPU adds; the cross-lane reduction is done once in the wrapper.
    out_ref[...] += jnp.sum(loss.reshape(-1, SUBLANE, LANE), axis=0)


def focal_loss(pred, true, gamma=GAMMA, alpha=ALPHA, *, tile_rows=None, num_shards=None):
    """Mean-reduced focal loss. pred/true: arrays of identical shape (e.g. NCHW logits/targets)."""
    assert pred.shape == true.shape
    n_total = pred.size

    default_shards, default_tile = _tpu_defaults()
    if num_shards is None:
        num_shards = default_shards
    if tile_rows is None:
        tile_rows = default_tile

    # ---- Flatten in native dtype; pad only to an (8,128) vreg boundary ----------
    pred_flat = pred.reshape(-1)
    true_flat = true.reshape(-1)

    padded_n = _round_up(n_total, LANE * SUBLANE)   # at most 1023 pad elements
    pad = padded_n - n_total
    if pad:
        # x = -100, y = 0  ->  loss contribution is exactly 0 in f32.
        pred_flat = jnp.pad(pred_flat, (0, pad), constant_values=PAD_LOGIT)
        true_flat = jnp.pad(true_flat, (0, pad), constant_values=0)

    rows_total = padded_n // LANE                    # multiple of SUBLANE
    tile_rows = _round_up(max(int(tile_rows), SUBLANE), SUBLANE)
    tile_rows = min(tile_rows, rows_total)           # both multiples of 8

    real_steps = _cdiv(rows_total, tile_rows)
    num_shards = max(1, min(int(num_shards), real_steps))
    steps_per_shard = _cdiv(real_steps, num_shards)
    grid_steps = steps_per_shard * num_shards
    # Mask needed whenever the grid covers more rows than exist (partial edge tile
    # and/or shard rounding); otherwise the mask code is not emitted at all.
    need_mask = (grid_steps * tile_rows) != rows_total

    pred2d = pred_flat.reshape(rows_total, LANE)
    true2d = true_flat.reshape(rows_total, LANE)

    max_block = real_steps - 1

    def in_index_map(s, i):
        g = s * steps_per_shard + i
        # Clamp shard-rounding blocks that would start past the array; they re-read
        # the last real tile and are fully zeroed by the in-kernel mask.
        return (jnp.minimum(g, max_block), 0)

    kernel = functools.partial(
        _focal_loss_kernel, gamma=gamma, alpha=alpha,
        rows_total=rows_total, tile_rows=tile_rows,
        steps_per_shard=steps_per_shard, need_mask=need_mask)

    bytes_accessed = int(pred2d.size * pred2d.dtype.itemsize
                         + true2d.size * true2d.dtype.itemsize
                         + num_shards * SUBLANE * LANE * 4)
    cost = pl.CostEstimate(
        flops=int(16 * padded_n),
        transcendentals=int(4 * padded_n),
        bytes_accessed=bytes_accessed)

    partials = pl.pallas_call(
        kernel,
        out_shape=jax.ShapeDtypeStruct((num_shards, SUBLANE, LANE), jnp.float32),
        grid_spec=pltpu.PrefetchScalarGridSpec(
            num_scalar_prefetch=0,
            grid=(num_shards, steps_per_shard),
            in_specs=[
                pl.BlockSpec((tile_rows, LANE), in_index_map),
                pl.BlockSpec((tile_rows, LANE), in_index_map),
            ],
            # Per-shard (8,128) partial-sum block, resident across the reduction axis.
            out_specs=pl.BlockSpec((None, SUBLANE, LANE), lambda s, i: (s, 0, 0)),
        ),
        compiler_params=pltpu.CompilerParams(
            dimension_semantics=("parallel", "arbitrary"),
        ),
        cost_estimate=cost,
    )(pred2d, true2d)

    # reduction == 'mean' (default BCEWithLogitsLoss reduction)
    return jnp.sum(partials) / jnp.float32(n_total)


def _focal_loss_ref(pred, true, gamma=GAMMA, alpha=ALPHA):
    x = pred.astype(jnp.float32)
    y = true.astype(jnp.float32)
    bce = jnp.maximum(x, 0.0) - x * y + jnp.log1p(jnp.exp(-jnp.abs(x)))
    p = jax.nn.sigmoid(x)
    p_t = y * p + (1.0 - y) * (1.0 - p)
    af = y * alpha + (1.0 - y) * (1.0 - alpha)
    mf = (1.0 - p_t) ** gamma
    return jnp.mean(bce * af * mf)


if __name__ == "__main__":
    key = jax.random.PRNGKey(0)
    k_pred, k_true = jax.random.split(key)

    # 1) Aligned f32 NCHW logits / {0,1} targets (no padding, single tile).
    shape = (2, 4, 16, 16)
    pred = jax.random.normal(k_pred, shape, dtype=jnp.float32) * 2.0
    true = jax.random.bernoulli(k_true, p=0.3, shape=shape).astype(jnp.float32)
    out = jax.block_until_ready(focal_loss(pred, true))
    ref = _focal_loss_ref(pred, true)
    assert jnp.allclose(out, ref, rtol=5e-3, atol=1e-6), (out, ref)

    # 2) Element count not a multiple of 128 (lane/sublane padding path).
    shape2 = (3, 5, 7, 11)
    pred2 = jax.random.normal(k_pred, shape2, dtype=jnp.float32) * 3.0
    true2 = jax.random.bernoulli(k_true, p=0.5, shape=shape2).astype(jnp.float32)
    out2 = jax.block_until_ready(focal_loss(pred2, true2))
    ref2 = _focal_loss_ref(pred2, true2)
    assert jnp.allclose(out2, ref2, rtol=5e-3, atol=1e-6), (out2, ref2)

    # 3) bf16 ingestion (cast-on-load) + partial-tile in-kernel masking.
    shape3 = (1, 3, 32, 31)
    pred3 = (jax.random.normal(k_pred, shape3, dtype=jnp.float32) * 2.0).astype(jnp.bfloat16)
    true3 = jax.random.bernoulli(k_true, p=0.4, shape=shape3).astype(jnp.bfloat16)
    out3 = jax.block_until_ready(focal_loss(pred3, true3, tile_rows=16, num_shards=1))
    ref3 = _focal_loss_ref(pred3, true3)
    assert jnp.allclose(out3, ref3, rtol=5e-3, atol=1e-6), (out3, ref3)

    # 4) Two-shard grid (v7x-style layout) with an odd number of real tiles:
    #    exercises the clamped index_map and the fully-masked padding block.
    out4 = jax.block_until_ready(focal_loss(pred3, true3, tile_rows=8, num_shards=2))
    assert jnp.allclose(out4, ref3, rtol=5e-3, atol=1e-6), (out4, ref3)

    print("KERNEL_OK")
</pallas_src>

<mosaic_0001>
module attributes {stable_mosaic.version = 11 : i64} {
  func.func @_focal_loss_kernel(%arg0: i32, %arg1: i32, %arg2: memref<16x128xf32, #tpu.memory_space<vmem>>, %arg3: memref<16x128xf32, #tpu.memory_space<vmem>>, %arg4: memref<1x8x128xf32, #tpu.memory_space<vmem>>) attributes {dimension_semantics = [#tpu.dimension_semantics<parallel>, #tpu.dimension_semantics<arbitrary>], iteration_bounds = array<i64: 1, 1>, scalar_prefetch = 0 : i64, scratch_operands = 0 : i64, tpu.core_type = #tpu.core_type<tc>, window_params = [{transform_indices = @transform_0, window_bounds = array<i64: 16, 128>}, {transform_indices = @transform_1, window_bounds = array<i64: 16, 128>}, {transform_indices = @transform_2, window_bounds = array<i64: 1, 8, 128>}]} {
    %c0_i32 = arith.constant 0 : i32
    %0 = arith.cmpi eq, %arg1, %c0_i32 : i32
    %1 = arith.extui %0 : i1 to i32
    %c0_i32_0 = arith.constant 0 : i32
    %2 = arith.cmpi ne, %1, %c0_i32_0 : i32
    scf.if %2 {
      %cst_17 = arith.constant 0.000000e+00 : f32
      %43 = vector.broadcast %cst_17 : f32 to vector<8x128xf32>
      %c0_18 = arith.constant 0 : index
      %c0_19 = arith.constant 0 : index
      %c0_20 = arith.constant 0 : index
      %44 = vector.load %arg4[%c0_18, %c0_19, %c0_20] : memref<1x8x128xf32, #tpu.memory_space<vmem>>, vector<1x8x128xf32>
      %45 = vector.shape_cast %44 : vector<1x8x128xf32> to vector<8x128xf32>
      %46 = vector.shape_cast %43 : vector<8x128xf32> to vector<1x8x128xf32>
      tpu.vector_store %arg4[%c0_18, %c0_19, %c0_20], %46 {strides = array<i32>} : memref<1x8x128xf32, #tpu.memory_space<vmem>>, vector<1x8x128xf32>,
    } else {
    }
    %c0 = arith.constant 0 : index
    %c0_1 = arith.constant 0 : index
    %3 = vector.load %arg2[%c0, %c0_1] : memref<16x128xf32, #tpu.memory_space<vmem>>, vector<16x128xf32>
    %c0_2 = arith.constant 0 : index
    %c0_3 = arith.constant 0 : index
    %4 = vector.load %arg3[%c0_2, %c0_3] : memref<16x128xf32, #tpu.memory_space<vmem>>, vector<16x128xf32>
    %5 = math.absf %3 : vector<16x128xf32>
    %cst = arith.constant 0.000000e+00 : f32
    %6 = vector.broadcast %cst : f32 to vector<16x128xf32>
    %7 = arith.subf %6, %5 : vector<16x128xf32>
    %8 = math.exp %7 : vector<16x128xf32>
    %cst_4 = arith.constant 0.000000e+00 : f32
    %9 = vector.broadcast %cst_4 : f32 to vector<16x128xf32>
    %10 = arith.maximumf %3, %9 : vector<16x128xf32>
    %11 = arith.mulf %3, %4 : vector<16x128xf32>
    %12 = arith.subf %10, %11 : vector<16x128xf32>
    %13 = math.log1p %8 : vector<16x128xf32>
    %14 = arith.addf %12, %13 : vector<16x128xf32>
    %cst_5 = arith.constant 1.000000e+00 : f32
    %15 = vector.broadcast %cst_5 : f32 to vector<16x128xf32>
    %16 = arith.addf %15, %8 : vector<16x128xf32>
    %17 = tpu.reciprocal %16 {approx = true} : vector<16x128xf32> -> vector<16x128xf32>
    %cst_6 = arith.constant 0.000000e+00 : f32
    %18 = vector.broadcast %cst_6 : f32 to vector<16x128xf32>
    %19 = arith.cmpf oge, %3, %18 : vector<16x128xf32>
    %20 = arith.mulf %8, %17 : vector<16x128xf32>
    %21 = arith.select %19, %17, %20 : vector<16x128xi1>, vector<16x128xf32>
    %22 = arith.addf %21, %4 : vector<16x128xf32>
    %cst_7 = arith.constant 2.000000e+00 : f32
    %23 = vector.broadcast %cst_7 : f32 to vector<16x128xf32>
    %24 = arith.mulf %23, %21 : vector<16x128xf32>
    %25 = arith.mulf %24, %4 : vector<16x128xf32>
    %26 = arith.subf %22, %25 : vector<16x128xf32>
    %cst_8 = arith.constant -5.000000e-01 : f32
    %27 = vector.broadcast %cst_8 : f32 to vector<16x128xf32>
    %28 = arith.mulf %4, %27 : vector<16x128xf32>
    %cst_9 = arith.constant 7.500000e-01 : f32
    %29 = vector.broadcast %cst_9 : f32 to vector<16x128xf32>
    %30 = arith.addf %29, %28 : vector<16x128xf32>
    %31 = math.sqrt %26 : vector<16x128xf32>
    %32 = arith.mulf %26, %31 : vector<16x128xf32>
    %33 = arith.mulf %14, %30 : vector<16x128xf32>
    %34 = arith.mulf %33, %32 : vector<16x128xf32>
    %c0_10 = arith.constant 0 : index
    %c0_11 = arith.constant 0 : index
    %c0_12 = arith.constant 0 : index
    %35 = vector.load %arg4[%c0_10, %c0_11, %c0_12] : memref<1x8x128xf32, #tpu.memory_space<vmem>>, vector<1x8x128xf32>
    %36 = vector.shape_cast %35 : vector<1x8x128xf32> to vector<8x128xf32>
    %37 = vector.shape_cast %34 : vector<16x128xf32> to vector<2x8x128xf32>
    %cst_13 = arith.constant dense<0.000000e+00> : vector<8x128xf32>
    %38 = vector.multi_reduction <add>, %37, %cst_13 [0] : vector<2x8x128xf32> to vector<8x128xf32>
    %39 = arith.addf %36, %38 : vector<8x128xf32>
    %c0_14 = arith.constant 0 : index
    %c0_15 = arith.constant 0 : index
    %c0_16 = arith.constant 0 : index
    %40 = vector.load %arg4[%c0_14, %c0_15, %c0_16] : memref<1x8x128xf32, #tpu.memory_space<vmem>>, vector<1x8x128xf32>
    %41 = vector.shape_cast %40 : vector<1x8x128xf32> to vector<8x128xf32>
    %42 = vector.shape_cast %39 : vector<8x128xf32> to vector<1x8x128xf32>
    tpu.vector_store %arg4[%c0_14, %c0_15, %c0_16], %42 {strides = array<i32>} : memref<1x8x128xf32, #tpu.memory_space<vmem>>, vector<1x8x128xf32>,
    return
  }
  func.func @transform_0(%arg0: i32, %arg1: i32) -> (i32, i32) {
    %c1_i32 = arith.constant 1 : i32
    %0 = arith.muli %arg0, %c1_i32 : i32
    %1 = arith.addi %0, %arg1 : i32
    %c0_i32 = arith.constant 0 : i32
    %2 = arith.minsi %1, %c0_i32 : i32
    %c0_i32_0 = arith.constant 0 : i32
    %c0_i32_1 = arith.constant 0 : i32
    return %2, %c0_i32_0 : i32, i32
  }
  func.func @transform_1(%arg0: i32, %arg1: i32) -> (i32, i32) {
    %c1_i32 = arith.constant 1 : i32
    %0 = arith.muli %arg0, %c1_i32 : i32
    %1 = arith.addi %0, %arg1 : i32
    %c0_i32 = arith.constant 0 : i32
    %2 = arith.minsi %1, %c0_i32 : i32
    %c0_i32_0 = arith.constant 0 : i32
    %c0_i32_1 = arith.constant 0 : i32
    return %2, %c0_i32_0 : i32, i32
  }
  func.func @transform_2(%arg0: i32, %arg1: i32) -> (i32, i32, i32) {
    %c0_i32 = arith.constant 0 : i32
    %c0_i32_0 = arith.constant 0 : i32
    %c0_i32_1 = arith.constant 0 : i32
    return %arg0, %c0_i32, %c0_i32_0 : i32, i32, i32
  }
}

</mosaic_0001>

<llo_original>
// kernel: tpu_custom_call.1
$region0: #{tpu_custom_call.1}
  #allocation0 [shape = 'u32[]', space=smem, size = 0x4, offset = 0x4, fixed_abs, tag = 'smem constant byte address 0x4 - core index']
  #allocation1 [shape = 'u32[144,128]{1,0:T(1,128)}', space=vmem, size = 0x12000, scoped, tag = 'internal scratch']
  %s0 = inlined_call_operand.hbm [shape: f32[16,128], index: 0, kind: input, shape index: {}]
  %s1 = inlined_call_operand.hbm [shape: f32[16,128], index: 1, kind: input, shape index: {}]
  %s2 = inlined_call_operand.hbm [shape: f32[1,8,128], index: 2, kind: output, shape index: {}]
  %s3 = sld [smem:[#allocation0]]
  $region30: #{tpu_custom_call.1} parent=0
    _
  %s5 = ssub.s32 1, %s3
  %s6 = scalar_select 0, %s5, %s3
  $region1: #{tpu_custom_call.1} parent=0
    #allocation2 [shape = 'u8[8192]{0}', space=vmem, size = 0x2000, scoped, tag = 'input window, operand 0, single buffered']
    #allocation3 [shape = 's32[1]{0}', space=sflag, size = 0x4, scoped, tag = 'scoped memory for tpu_custom_call.1']
    #allocation4 [shape = 's32[1]{0}', space=sflag, size = 0x4, scoped, tag = 'scoped memory for tpu_custom_call.1']
    #allocation5 [shape = 'u8[8192]{0}', space=vmem, size = 0x2000, scoped, tag = 'input window, operand 1, single buffered']
    #allocation6 [shape = 's32[1]{0}', space=sflag, size = 0x4, scoped, tag = 'scoped memory for tpu_custom_call.1']
    #allocation7 [shape = 'u8[4096]{0}', space=vmem, size = 0x1000, scoped, tag = 'output window, operand 0, single buffered']
    %7 = vsyncpa [#allocation3], 0
    %8 = vsyncpa [#allocation6], 0
    %9 = vsyncpa [#allocation4], 0
    // Predicated region
    $region2: #{tpu_custom_call.1} parent=1 // pred_check
      _
    $region3: #{tpu_custom_call.1} parent=1 // pred_check_branch
      %11 = sbr.rel (0) target = $region5
    $region4: #{tpu_custom_call.1} parent=1 // pred_region
      %s12 = sadd.s32 0, 0
      %p13 = scmp.lt.s32.totalorder %s12, 0
      %s14 = scalar_select %p13, %s12, 0
      %s15 = smul.u32 2, %s14
      %s17 = ssub.s32 256, 256
      %18 = vsyncadd [#allocation3], %s17
      %s19 = smul.addr %s15, 128
      %s20 = scalar_lea.hbm %s0, %s19
      %s21 = sshll.u32 [#allocation2], 4
      %s22 = int_to_ptr.vmem [resolvable:$true] %s21
      %27 = dma.hbm_to_vmem [thread:$0]  %s20, 256, %s22, [#allocation3], 128, 128, 8
    $region5: #{tpu_custom_call.1} parent=1 // pred_fallthru
      _
    // Predicated region
    $region6: #{tpu_custom_call.1} parent=1 // pred_check
      _
    $region7: #{tpu_custom_call.1} parent=1 // pred_check_branch
      %29 = sbr.rel (0) target = $region9
    $region8: #{tpu_custom_call.1} parent=1 // pred_region
      %s30 = sadd.s32 0, 0
      %p31 = scmp.lt.s32.totalorder %s30, 0
      %s32 = scalar_select %p31, %s30, 0
      %s33 = smul.u32 2, %s32
      %s35 = ssub.s32 256, 256
      %36 = vsyncadd [#allocation6], %s35
      %s37 = smul.addr %s33, 128
      %s38 = scalar_lea.hbm %s1, %s37
      %s39 = sshll.u32 [#allocation5], 4
      %s40 = int_to_ptr.vmem [resolvable:$true] %s39
      %45 = dma.hbm_to_vmem [thread:$0]  %s38, 256, %s40, [#allocation6], 128, 128, 8
    $region9: #{tpu_custom_call.1} parent=1 // pred_fallthru
      _
    // Predicated region
    $region10: #{tpu_custom_call.1} parent=1 // pred_check
      _
    $region11: #{tpu_custom_call.1} parent=1 // pred_check_branch
      %47 = sbr.rel (0) target = $region13
    $region12: #{tpu_custom_call.1} parent=1 // pred_region
      %48 = dma.done [#allocation3], 256
    $region13: #{tpu_custom_call.1} parent=1 // pred_fallthru
      _
    // Predicated region
    $region14: #{tpu_custom_call.1} parent=1 // pred_check
      _
    $region15: #{tpu_custom_call.1} parent=1 // pred_check_branch
      %50 = sbr.rel (0) target = $region17
    $region16: #{tpu_custom_call.1} parent=1 // pred_region
      %51 = dma.done [#allocation6], 256
    $region17: #{tpu_custom_call.1} parent=1 // pred_fallthru
      _
    %s52 = sadd.s32 0, 0
    %p53 = scmp.lt.s32.totalorder %s52, 0
    %s54 = scalar_select %p53, %s52, 0
    %s55 = smul.u32 2, %s54
    %s56 = sadd.s32 0, 0
    %p57 = scmp.lt.s32.totalorder %s56, 0
    %s58 = scalar_select %p57, %s56, 0
    %s59 = smul.u32 2, %s58
    %p60 = scmp.eq.s32.totalorder 0, 0
    // Predicated region
    $region18: #{tpu_custom_call.1} parent=1 // pred_check
      %p61 = pneg %p60
    $region19: #{tpu_custom_call.1} parent=1 // pred_check_branch
      %63 = sbr.rel (%p61) target = $region21
    $region20: #{tpu_custom_call.1} parent=1 // pred_region
      %64 = vst [vmem:[#allocation7] sm:$0xff] 0.0
    $region21: #{tpu_custom_call.1} parent=1 // pred_fallthru
      _
    %v65 = vld [vmem:[#allocation2] sm:$0xff]
    %v66 = vld [vmem:[#allocation2 + $0x8] sm:$0xff]
    %v67 = vld [vmem:[#allocation5] sm:$0xff]
    %v68 = vld [vmem:[#allocation5 + $0x8] sm:$0xff]
    %v69 = vand.u32 2147483647, %v65
    %v70 = vand.u32 2147483647, %v66
    %v71 = vsub.f32 0.0, %v69
    %v72 = vsub.f32 0.0, %v70
    %v73 = vmul.f32 %v71, 1.442695
    %v74 = vpow.pop %v73
    %v75 = vmul.f32 %v72, 1.442695
    %v76 = vpow.pop %v75
    %v77 = vmax.f32 %v65, 0.0
    %v78 = vmax.f32 %v66, 0.0
    %v79 = vmul.f32 %v65, %v67
    %v80 = vmul.f32 %v66, %v68
    %v81 = vsub.f32 %v77, %v79
    %v82 = vsub.f32 %v78, %v80
    %v83 = vadd.f32 %v74, 1.0
    %v84 = vlog2.pop %v83
    %v85 = vmul.f32 %v84, 0.6931472
    %v86 = vmul.f32 -0.5, %v74
    %v87 = vadd.f32 %v86, 1.0
    %v88 = vmul.f32 %v87, %v74
    %v89 = vand.u32 2147483647, %v74
    %vm90 = vcmp.lt.f32.partialorder %v89, 0.0004427343
    %v91 = vsel %vm90, %v88, %v85
    %v92 = vadd.f32 %v76, 1.0
    %v93 = vlog2.pop %v92
    %v94 = vmul.f32 %v93, 0.6931472
    %v95 = vmul.f32 -0.5, %v76
    %v96 = vadd.f32 %v95, 1.0
    %v97 = vmul.f32 %v96, %v76
    %v98 = vand.u32 2147483647, %v76
    %vm99 = vcmp.lt.f32.partialorder %v98, 0.0004427343
    %v100 = vsel %vm99, %v97, %v94
    %v101 = vadd.f32 %v81, %v91
    %v102 = vadd.f32 %v82, %v100
    %v103 = vadd.f32 %v74, 1.0
    %v104 = vadd.f32 %v76, 1.0
    %v105 = vrcp.pop %v103
    %v106 = vrcp.pop %v104
    %vm107 = vcmp.ge.f32.partialorder %v65, 0.0
    %vm108 = vcmp.ge.f32.partialorder %v66, 0.0
    %v109 = vmul.f32 %v74, %v105
    %v110 = vmul.f32 %v76, %v106
    %v111 = vsel %vm107, %v105, %v109
    %v112 = vsel %vm108, %v106, %v110
    %v113 = vadd.f32 %v111, %v67
    %v114 = vadd.f32 %v112, %v68
    %v115 = vmul.f32 %v111, 2.0
    %v116 = vmul.f32 %v112, 2.0
    %v117 = vmul.f32 %v115, %v67
    %v118 = vmul.f32 %v116, %v68
    %v119 = vsub.f32 %v113, %v117
    %v120 = vsub.f32 %v114, %v118
    %v121 = vmul.f32 %v67, -0.5
    %v122 = vmul.f32 %v68, -0.5
    %v123 = vadd.f32 %v121, 0.75
    %v124 = vadd.f32 %v122, 0.75
    %v125 = vrsqrt.pop %v119
    %v126 = vmul.f32 %v119, %v125
    %vm127 = vcmp.eq.f32.partialorder %v119, inf
    %v128 = vsel %vm127, %v119, %v126
    %vm129 = vcmp.eq.f32.partialorder %v119, 0.0
    %v130 = vand.u32 %v119, 2147483648
    %v131 = vsel %vm129, %v130, %v128
    %v132 = vrsqrt.pop %v120
    %v133 = vmul.f32 %v120, %v132
    %vm134 = vcmp.eq.f32.partialorder %v120, inf
    %v135 = vsel %vm134, %v120, %v133
    %vm136 = vcmp.eq.f32.partialorder %v120, 0.0
    %v137 = vand.u32 %v120, 2147483648
    %v138 = vsel %vm136, %v137, %v135
    %v139 = vmul.f32 %v119, %v131
    %v140 = vmul.f32 %v120, %v138
    %v141 = vmul.f32 %v101, %v123
    %v142 = vmul.f32 %v102, %v124
    %v143 = vmul.f32 %v141, %v139
    %v144 = vmul.f32 %v142, %v140
    %v145 = vld [vmem:[#allocation7] sm:$0xff]
    %v146 = vadd.f32 %v143, %v144
    %v147 = vadd.f32 %v145, %v146
    %148 = vst [vmem:[#allocation7] sm:$0xff] %v147
    // Predicated region
    $region22: #{tpu_custom_call.1} parent=1 // pred_check
      _
    $region23: #{tpu_custom_call.1} parent=1 // pred_check_branch
      %150 = sbr.rel (0) target = $region25
    $region24: #{tpu_custom_call.1} parent=1 // pred_region
      %s152 = ssub.s32 128, 128
      %153 = vsyncadd [#allocation4], %s152
      %s155 = sshll.u32 [#allocation7], 4
      %s156 = int_to_ptr.vmem [resolvable:$true] %s155
      %158 = dma.vmem_to_hbm [thread:$0]  %s156, 128, %s2, [#allocation4]
    $region25: #{tpu_custom_call.1} parent=1 // pred_fallthru
      _
    // Predicated region
    $region26: #{tpu_custom_call.1} parent=1 // pred_check
      _
    $region27: #{tpu_custom_call.1} parent=1 // pred_check_branch
      %160 = sbr.rel (0) target = $region29
    $region28: #{tpu_custom_call.1} parent=1 // pred_region
      %161 = dma.done [#allocation4], 128
    $region29: #{tpu_custom_call.1} parent=1 // pred_fallthru
      _
    %162 = vsyncpa [#allocation3], 1
    %163 = vsyncpa [#allocation6], 1
    %164 = vsyncpa [#allocation4], 1

</llo_original>
